<compile_context>
chip_gen: v5e
topology: v5e:2x2
jax: 0.10.0
libtpu: 0.0.40
codegen_flags: <defaults>
</compile_context>

<pallas_src>
import jax
import jax.numpy as jnp
from jax.experimental import pallas as pl
from jax.experimental.pallas import tpu as pltpu


def _round_up(x: int, m: int) -> int:
    return ((x + m - 1) // m) * m


def residual_linear_kernel(x_ref, w_ref, b_ref, o_ref):
    # fn(x) = x @ W + b ; out = fn(x) + x   (ResidualAdd semantics)
    x = x_ref[...]                                        # (tile_m, H)
    y = jnp.dot(x.astype(jnp.bfloat16), w_ref[...],      # bf16 MXU matmul
                preferred_element_type=jnp.float32)       # f32 accumulation
    y = y + b_ref[...]                                    # bias in f32
    o_ref[...] = (y + x.astype(jnp.float32)).astype(o_ref.dtype)  # residual


def residual_add(x, w, b, *, tile_m=512):
    """out = (x @ w + b) + x.   x: (B, S, H); w: (H, H); b: (H,)."""
    B, S, H = x.shape
    M = B * S
    x2d = x.reshape(M, H)                      # no pad copy: just a reshape

    w_bf16 = w.astype(jnp.bfloat16)            # resident weight, bf16
    b2d = b.reshape(1, H).astype(jnp.float32)  # bias as a (1, H) row

    act_bytes = jnp.dtype(x.dtype).itemsize    # bf16 x -> bf16 out (half traffic)

    # --- VMEM budget (VMEM blocks are laid out on (8, 128) hardware tiles) ---
    H_lane = _round_up(H, 128)

    def vmem_budget(tm):
        tm = _round_up(tm, 8)
        return (H_lane * H_lane * 2              # W resident, single buffer
                + 8 * H_lane * 4                 # bias row (padded), single buffer
                + 2 * tm * H_lane * act_bytes    # x tile, double-buffered
                + 2 * tm * H_lane * act_bytes)   # out tile, double-buffered

    # Row tile: multiple of 8, no bigger than the (rounded-up) row count, and
    # shrunk until the budget fits a conservative cap (v7x has 64 MiB physical
    # VMEM per TensorCore; leave headroom for compiler-internal scratch).
    _VMEM_CAP = 48 * 1024 * 1024
    tile_m = max(8, min(_round_up(tile_m, 8), _round_up(M, 8)))
    while tile_m > 8 and vmem_budget(tile_m) > _VMEM_CAP:
        tile_m = max(8, _round_up(tile_m // 2, 8))
    # TODO(synk): for very large hidden (H_lane >~ 4-5k) the resident bf16 W no
    # longer fits v7x's 64 MiB VMEM even single-buffered; switch to an N-tiled
    # grid (grid=(M tiles, N tiles)) that streams W column blocks while keeping
    # the x row tile resident across the N sweep.

    grid = (pl.cdiv(M, tile_m),)               # ragged last block is masked

    vmem_limit = int(min(64 * 1024 * 1024,
                         max(32 * 1024 * 1024,
                             vmem_budget(tile_m) + 4 * 1024 * 1024)))

    bytes_accessed = (M * H * act_bytes        # x in
                      + H * H * 2              # W in (bf16)
                      + H * 4                  # bias in (f32)
                      + M * H * act_bytes)     # out

    out = pl.pallas_call(
        residual_linear_kernel,
        out_shape=jax.ShapeDtypeStruct((M, H), x.dtype),
        grid_spec=pltpu.PrefetchScalarGridSpec(
            num_scalar_prefetch=0,
            grid=grid,
            in_specs=[
                # streamed activation row tile (double-buffered by default)
                pl.BlockSpec((tile_m, H), lambda i: (i, 0)),
                # resident weight / bias: constant block index -> single buffer
                pl.BlockSpec((H, H), lambda i: (0, 0),
                             pipeline_mode=pl.Buffered(1)),
                pl.BlockSpec((1, H), lambda i: (0, 0),
                             pipeline_mode=pl.Buffered(1)),
            ],
            out_specs=pl.BlockSpec((tile_m, H), lambda i: (i, 0)),
        ),
        compiler_params=pltpu.CompilerParams(
            # Rows are independent; on v7x pltpu.CORE_PARALLEL on this axis can
            # be used instead if plain "parallel" does not shard across the
            # two TensorCores.
            dimension_semantics=("parallel",),
            vmem_limit_bytes=vmem_limit,
        ),
        cost_estimate=pl.CostEstimate(
            flops=2 * M * H * H,
            transcendentals=0,
            bytes_accessed=bytes_accessed,
        ),
    )(x2d, w_bf16, b2d)

    return out.reshape(B, S, H)


if __name__ == "__main__":
    key = jax.random.PRNGKey(0)
    kx, kw, kb = jax.random.split(key, 3)

    batch, seq, hidden = 2, 8, 32
    x = jax.random.normal(kx, (batch, seq, hidden), dtype=jnp.float32)
    # deterministic parameter init for the inner fn (Linear(hidden, hidden))
    w = jax.random.normal(kw, (hidden, hidden), dtype=jnp.float32) * 0.02
    b = jax.random.normal(kb, (hidden,), dtype=jnp.float32) * 0.02

    # reference (plain JAX, f32): out == fn(x) + x
    ref = (x.reshape(-1, hidden) @ w + b).reshape(batch, seq, hidden) + x

    out = residual_add(x, w, b)
    jax.block_until_ready(out)

    assert out.shape == x.shape and out.dtype == x.dtype
    # bf16 matmul inputs with f32 accumulation vs f32 reference -> loose tol
    assert jnp.allclose(out, ref, atol=1e-2, rtol=1e-2), "mismatch vs reference"

    print("KERNEL_OK")
</pallas_src>

<mosaic_0001>
module attributes {stable_mosaic.version = 11 : i64} {
  func.func @residual_linear_kernel(%arg0: i32, %arg1: memref<16x32xf32, #tpu.memory_space<vmem>>, %arg2: memref<32x32xbf16, #tpu.memory_space<vmem>>, %arg3: memref<1x32xf32, #tpu.memory_space<vmem>>, %arg4: memref<16x32xf32, #tpu.memory_space<vmem>>) attributes {dimension_semantics = [#tpu.dimension_semantics<parallel>], iteration_bounds = array<i64: 1>, scalar_prefetch = 0 : i64, scratch_operands = 0 : i64, tpu.core_type = #tpu.core_type<tc>, window_params = [{transform_indices = @transform_0, window_bounds = array<i64: 16, 32>}, {pipeline_mode = #tpu.pipeline_mode<synchronous>, transform_indices = @transform_1, window_bounds = array<i64: 32, 32>}, {pipeline_mode = #tpu.pipeline_mode<synchronous>, transform_indices = @transform_2, window_bounds = array<i64: 1, 32>}, {transform_indices = @transform_3, window_bounds = array<i64: 16, 32>}]} {
    %c0 = arith.constant 0 : index
    %c0_0 = arith.constant 0 : index
    %0 = vector.load %arg1[%c0, %c0_0] : memref<16x32xf32, #tpu.memory_space<vmem>>, vector<16x32xf32>
    %1 = arith.truncf %0 : vector<16x32xf32> to vector<16x32xbf16>
    %c0_1 = arith.constant 0 : index
    %c0_2 = arith.constant 0 : index
    %2 = vector.load %arg2[%c0_1, %c0_2] : memref<32x32xbf16, #tpu.memory_space<vmem>>, vector<32x32xbf16>
    %cst = arith.constant dense<0.000000e+00> : vector<16x32xf32>
    %3 = tpu.matmul %1, %2, %cst {dimension_numbers = #tpu.dot_dimension_numbers<[1], [0], [0], [1], [0, 0, 1, 1], [], []>} : vector<16x32xbf16>, vector<32x32xbf16>, vector<16x32xf32> -> vector<16x32xf32>
    %c0_3 = arith.constant 0 : index
    %c0_4 = arith.constant 0 : index
    %4 = vector.load %arg3[%c0_3, %c0_4] : memref<1x32xf32, #tpu.memory_space<vmem>>, vector<1x32xf32>
    %5 = vector.broadcast %4 : vector<1x32xf32> to vector<16x32xf32>
    %6 = arith.addf %3, %5 : vector<16x32xf32>
    %7 = arith.addf %6, %0 : vector<16x32xf32>
    %c0_5 = arith.constant 0 : index
    %c0_6 = arith.constant 0 : index
    %8 = vector.load %arg4[%c0_5, %c0_6] : memref<16x32xf32, #tpu.memory_space<vmem>>, vector<16x32xf32>
    tpu.vector_store %arg4[%c0_5, %c0_6], %7 {strides = array<i32>} : memref<16x32xf32, #tpu.memory_space<vmem>>, vector<16x32xf32>,
    return
  }
  func.func @transform_0(%arg0: i32) -> (i32, i32) {
    %c0_i32 = arith.constant 0 : i32
    %c0_i32_0 = arith.constant 0 : i32
    return %arg0, %c0_i32 : i32, i32
  }
  func.func @transform_1(%arg0: i32) -> (i32, i32) {
    %c0_i32 = arith.constant 0 : i32
    %c0_i32_0 = arith.constant 0 : i32
    %c0_i32_1 = arith.constant 0 : i32
    return %c0_i32, %c0_i32_0 : i32, i32
  }
  func.func @transform_2(%arg0: i32) -> (i32, i32) {
    %c0_i32 = arith.constant 0 : i32
    %c0_i32_0 = arith.constant 0 : i32
    %c0_i32_1 = arith.constant 0 : i32
    return %c0_i32, %c0_i32_0 : i32, i32
  }
  func.func @transform_3(%arg0: i32) -> (i32, i32) {
    %c0_i32 = arith.constant 0 : i32
    %c0_i32_0 = arith.constant 0 : i32
    return %arg0, %c0_i32 : i32, i32
  }
}

</mosaic_0001>

<llo_original>
// kernel: tpu_custom_call.1
$region0: #{tpu_custom_call.1}
  #allocation0 [shape = 'u32[]', space=smem, size = 0x4, offset = 0x4, fixed_abs, tag = 'smem constant byte address 0x4 - core index']
  #allocation1 [shape = 'u32[72,128]{1,0:T(1,128)}', space=vmem, size = 0x9000, scoped, tag = 'internal scratch']
  %s0 = inlined_call_operand.hbm [shape: f32[16,32], index: 0, kind: input, shape index: {}]
  %s1 = inlined_call_operand.hbm [shape: bf16[32,32], index: 1, kind: input, shape index: {}]
  %s2 = inlined_call_operand.vmem [shape: f32[1,32], index: 2, kind: input, shape index: {}]
  %s3 = inlined_call_operand.hbm [shape: f32[16,32], index: 3, kind: output, shape index: {}]
  %s4 = sld [smem:[#allocation0]]
  $region30: #{tpu_custom_call.1} parent=0
    _
  %s6 = ssub.s32 1, %s4
  %s7 = scalar_select 0, %s6, %s4
  $region1: #{tpu_custom_call.1} parent=0
    #allocation2 [shape = 'u8[8192]{0}', space=vmem, size = 0x2000, scoped, tag = 'input window, operand 0, single buffered']
    #allocation3 [shape = 's32[1]{0}', space=sflag, size = 0x4, scoped, tag = 'scoped memory for tpu_custom_call.1']
    #allocation4 [shape = 's32[1]{0}', space=sflag, size = 0x4, scoped, tag = 'scoped memory for tpu_custom_call.1']
    #allocation5 [shape = 'u8[8192]{0}', space=vmem, size = 0x2000, scoped, tag = 'input window, operand 1, single buffered']
    #allocation6 [shape = 's32[1]{0}', space=sflag, size = 0x4, scoped, tag = 'scoped memory for tpu_custom_call.1']
    #allocation7 [shape = 'u8[8192]{0}', space=vmem, size = 0x2000, scoped, tag = 'output window, operand 0, single buffered']
    %8 = vsyncpa [#allocation3], 0
    %9 = vsyncpa [#allocation6], 0
    %10 = vsyncpa [#allocation4], 0
    // Predicated region
    $region2: #{tpu_custom_call.1} parent=1 // pred_check
      _
    $region3: #{tpu_custom_call.1} parent=1 // pred_check_branch
      %12 = sbr.rel (0) target = $region5
    $region4: #{tpu_custom_call.1} parent=1 // pred_region
      %14 = vsyncadd [#allocation3], 0
      %s15 = sshll.u32 %s0, 4
      %s16 = int_to_ptr.hbm [resolvable:$true] %s15
      %s17 = sshll.u32 [#allocation2], 4
      %s18 = int_to_ptr.vmem [resolvable:$true] %s17
      %23 = dma.hbm_to_vmem [thread:$0]  %s16, 256, %s18, [#allocation3], 128, 128, 8
    $region5: #{tpu_custom_call.1} parent=1 // pred_fallthru
      _
    // Predicated region
    $region6: #{tpu_custom_call.1} parent=1 // pred_check
      _
    $region7: #{tpu_custom_call.1} parent=1 // pred_check_branch
      %25 = sbr.rel (0) target = $region9
    $region8: #{tpu_custom_call.1} parent=1 // pred_region
      %27 = vsyncadd [#allocation6], 0
      %s28 = sshll.u32 %s1, 4
      %s29 = int_to_ptr.hbm [resolvable:$true] %s28
      %s30 = sshll.u32 [#allocation5], 4
      %s31 = int_to_ptr.vmem [resolvable:$true] %s30
      %36 = dma.hbm_to_vmem [thread:$0]  %s29, 256, %s31, [#allocation6], 64, 64, 4
    $region9: #{tpu_custom_call.1} parent=1 // pred_fallthru
      _
    // Predicated region
    $region10: #{tpu_custom_call.1} parent=1 // pred_check
      _
    $region11: #{tpu_custom_call.1} parent=1 // pred_check_branch
      %38 = sbr.rel (0) target = $region13
    $region12: #{tpu_custom_call.1} parent=1 // pred_region
      _
    $region13: #{tpu_custom_call.1} parent=1 // pred_fallthru
      _
    // Predicated region
    $region14: #{tpu_custom_call.1} parent=1 // pred_check
      _
    $region15: #{tpu_custom_call.1} parent=1 // pred_check_branch
      %40 = sbr.rel (0) target = $region17
    $region16: #{tpu_custom_call.1} parent=1 // pred_region
      %42 = dma.done [#allocation3], 256
    $region17: #{tpu_custom_call.1} parent=1 // pred_fallthru
      _
    // Predicated region
    $region18: #{tpu_custom_call.1} parent=1 // pred_check
      _
    $region19: #{tpu_custom_call.1} parent=1 // pred_check_branch
      %44 = sbr.rel (0) target = $region21
    $region20: #{tpu_custom_call.1} parent=1 // pred_region
      %46 = dma.done [#allocation6], 256
    $region21: #{tpu_custom_call.1} parent=1 // pred_fallthru
      _
    %v48 = vld [vmem:[#allocation2] sm:$0xff]
    %v49 = vld [vmem:[#allocation2 + $0x8] sm:$0xff]
    %v50 = vpack.c.bf16 %v49, %v48
    %v51 = vld [vmem:[#allocation5] sm:$0xf]
    %v52 = vld [vmem:[#allocation5 + $0x4] sm:$0xf]
    %v53 = vld [vmem:[#allocation5 + $0x8] sm:$0xf]
    %v54 = vld [vmem:[#allocation5 + $0xc] sm:$0xf]
    %v55 = vld [vmem:[%s2] sm:$0x1]
    %v57 = vperm.slane %v55, 0
    %v63 = vunpack.c.l.b16 %v51
    %v64 = vunpack.c.l.b16 %v52
    %v65 = vunpack.c.l.b16 %v53
    %v66 = vunpack.c.l.b16 %v54
    %v67 = vpack.c.b16 %v64, %v63
    %v68 = vpack.c.b16 %v66, %v65
    %vm71 = vcmask 261120
    %v73 = vsel %vm71, %v50, 0
    %75 = vmatpush.bf16.msra.mxu0 0
    %76 = vmatpush.bf16.msra.mxu0 0
    %77 = vmatpush.bf16.msra.mxu0 0
    %78 = vmatpush.bf16.msra.mxu0 0
    %79 = vmatpush.bf16.msra.mxu0 0
    %80 = vmatpush.bf16.msra.mxu0 0
    %81 = vmatpush.bf16.msra.mxu0 %v68
    %82 = vmatpush.bf16.msra.mxu0 %v67
    %83 = vmatmul.bf16.gmra.mxu0 %v73
    %v84 = vpop.f32.mrf.mxu0
    %v85 = vadd.f32 %v57, %v84
    %v86 = vpop.f32.mrf.mxu0
    %v87 = vadd.f32 %v57, %v86
    %88 = vdwg.mxu0
    %v89 = vadd.f32 %v85, %v48
    %v90 = vadd.f32 %v87, %v49
    %91 = vst.msk [vmem:[#allocation7] sm:$0xff] %vm71, %v89
    %92 = vst.msk [vmem:[#allocation7 + $0x8] sm:$0xff] %vm71, %v90
    // Predicated region
    $region22: #{tpu_custom_call.1} parent=1 // pred_check
      _
    $region23: #{tpu_custom_call.1} parent=1 // pred_check_branch
      %94 = sbr.rel (0) target = $region25
    $region24: #{tpu_custom_call.1} parent=1 // pred_region
      %96 = vsyncadd [#allocation4], 0
      %s97 = sshll.u32 [#allocation7], 4
      %s98 = int_to_ptr.vmem [resolvable:$true] %s97
      %s99 = sshll.u32 %s3, 4
      %s100 = int_to_ptr.hbm [resolvable:$true] %s99
      %105 = dma.vmem_to_hbm [thread:$0]  %s98, 256, %s100, [#allocation4], 128, 128, 8
    $region25: #{tpu_custom_call.1} parent=1 // pred_fallthru
      _
    // Predicated region
    $region26: #{tpu_custom_call.1} parent=1 // pred_check
      _
    $region27: #{tpu_custom_call.1} parent=1 // pred_check_branch
      %107 = sbr.rel (0) target = $region29
    $region28: #{tpu_custom_call.1} parent=1 // pred_region
      %109 = dma.done [#allocation4], 256
    $region29: #{tpu_custom_call.1} parent=1 // pred_fallthru
      _
    %110 = vsyncpa [#allocation3], 1
    %111 = vsyncpa [#allocation6], 1
    %112 = vsyncpa [#allocation4], 1

</llo_original>
